<compile_context>
chip_gen: v6e
topology: v6e:2x2x1
jax: 0.10.0
libtpu: 0.0.40
codegen_flags: <defaults>
</compile_context>

<pallas_src>
import functools

import jax
import jax.numpy as jnp
from jax import lax
from jax.experimental import pallas as pl
from jax.experimental.pallas import tpu as pltpu


def _vmem_limit():
    """Chip-aware scoped VMEM limit: 3/4 of physical, capped at 96 MiB."""
    try:
        cap = pltpu.get_tpu_info().vmem_capacity_bytes
    except Exception:
        cap = 64 * 1024 * 1024  # conservative (v7x per-TC VMEM)
    return max(32 * 1024 * 1024, min((int(cap) * 3) // 4, 96 * 1024 * 1024))


def _pick_tile(dim, prefs=(256, 128)):
    """Largest preferred tile that evenly divides `dim`, else the full extent."""
    for p in prefs:
        if dim % p == 0:
            return p
    return dim
    # TODO(synk): add a padding path for dims not divisible by 128 at
    # production shapes (currently falls back to the full extent).


# ---------------------------------------------------------------------------
# Kernel 1: tiled linear  y = x @ Wt + b   (Wt PRE-transposed: (K, N), bf16,
#           held resident in VMEM across the whole M grid).
# ---------------------------------------------------------------------------
def _linear_kernel(x_ref, wt_ref, b_ref, o_ref):
    acc = jnp.dot(x_ref[...], wt_ref[...], preferred_element_type=jnp.float32)
    o_ref[...] = (acc + b_ref[...]).astype(o_ref.dtype)


def linear(x, w_t, b, out_dtype=None):
    """x: (M, K) bf16, w_t: (K, N) bf16 pre-transposed weight, b: (1, N) f32."""
    M, K = x.shape
    K2, N = w_t.shape
    assert K == K2
    out_dtype = out_dtype or x.dtype
    tm = _pick_tile(M, (512, 256, 128))

    # Weight/bias index maps are constant -> DMA'd once, resident in VMEM.
    # TODO(synk): for very large hidden sizes (bf16 weight > ~32 MiB) add an
    # N-tiled / K-accumulated path instead of holding the whole weight.
    return pl.pallas_call(
        _linear_kernel,
        out_shape=jax.ShapeDtypeStruct((M, N), out_dtype),
        grid_spec=pltpu.PrefetchScalarGridSpec(
            num_scalar_prefetch=0,
            grid=(M // tm,),
            in_specs=[
                pl.BlockSpec((tm, K), lambda i: (i, 0)),
                pl.BlockSpec((K, N), lambda i: (0, 0)),   # resident weight
                pl.BlockSpec((1, N), lambda i: (0, 0)),   # resident bias (f32)
            ],
            out_specs=pl.BlockSpec((tm, N), lambda i: (i, 0)),
        ),
        compiler_params=pltpu.CompilerParams(
            dimension_semantics=("parallel",),
            vmem_limit_bytes=_vmem_limit()),
    )(x, w_t, b)


# ---------------------------------------------------------------------------
# Kernel 2: flash-style scaled-dot-product attention.
#   Per grid step: one query tile vs the whole resident K/V of one head.
#   Scaling is already folded into Q; online softmax carried in vregs.
# ---------------------------------------------------------------------------
def _flash_attn_kernel(q_ref, k_ref, v_ref, o_ref, *, tk, nsteps):
    q = q_ref[...]                            # (tq, hd) bf16, scale pre-folded
    tq, hd = q.shape

    def body(step, carry):
        m_prev, l_prev, acc_prev = carry
        start = pl.multiple_of(step * tk, tk)
        k = k_ref[pl.ds(start, tk), :]        # (tk, hd) bf16
        v = v_ref[pl.ds(start, tk), :]        # (tk, hd) bf16
        # q @ k^T: contract head dim of both operands (no materialized .T).
        s = lax.dot_general(q, k, (((1,), (1,)), ((), ())),
                            preferred_element_type=jnp.float32)  # (tq, tk) f32
        m_new = jnp.maximum(m_prev, jnp.max(s, axis=-1, keepdims=True))
        alpha = jnp.exp(m_prev - m_new)                          # (tq, 1)
        p = jnp.exp(s - m_new)                                   # (tq, tk)
        # TODO(synk): attention-weight dropout and mask paths omitted
        # (rate 0 / no masks supplied in this config).
        l_new = alpha * l_prev + jnp.sum(p, axis=-1, keepdims=True)
        acc_new = alpha * acc_prev + jnp.dot(
            p.astype(v.dtype), v, preferred_element_type=jnp.float32)
        return m_new, l_new, acc_new

    m0 = jnp.full((tq, 1), -jnp.inf, dtype=jnp.float32)
    l0 = jnp.zeros((tq, 1), dtype=jnp.float32)
    a0 = jnp.zeros((tq, hd), dtype=jnp.float32)
    m, l, acc = lax.fori_loop(0, nsteps, body, (m0, l0, a0),
                              unroll=(nsteps <= 8))

    inv = pl.reciprocal(l, approx=True)       # EUP slot, ~free
    o_ref[...] = (acc * inv).astype(o_ref.dtype)


def flash_attention(qp, kp, vp, *, B, S, num_heads, head_dim):
    """qp/kp/vp: (B*S, H) bf16 projection outputs, scaling folded into qp.

    Returns the merged-head context as (B*S, H) bf16.
    """
    H = num_heads * head_dim
    tq = _pick_tile(S, (256, 128))
    tk = _pick_tile(S, (128,))
    nsteps = S // tk
    kernel = functools.partial(_flash_attn_kernel, tk=tk, nsteps=nsteps)
    cparams = lambda n: pltpu.CompilerParams(
        dimension_semantics=("parallel",) * n,
        vmem_limit_bytes=_vmem_limit())

    if head_dim % 128 == 0:
        # Lane-aligned heads: grid directly over (B, S, H) -- no XLA head
        # split/merge transposes, lane-dense output stores.
        q3 = qp.reshape(B, S, H)
        k3 = kp.reshape(B, S, H)
        v3 = vp.reshape(B, S, H)
        out = pl.pallas_call(
            kernel,
            out_shape=jax.ShapeDtypeStruct((B, S, H), qp.dtype),
            grid_spec=pltpu.PrefetchScalarGridSpec(
                num_scalar_prefetch=0,
                grid=(B, num_heads, S // tq),
                in_specs=[
                    pl.BlockSpec((None, tq, head_dim), lambda b, h, qi: (b, qi, h)),
                    pl.BlockSpec((None, S, head_dim), lambda b, h, qi: (b, 0, h)),
                    pl.BlockSpec((None, S, head_dim), lambda b, h, qi: (b, 0, h)),
                ],
                out_specs=pl.BlockSpec((None, tq, head_dim),
                                       lambda b, h, qi: (b, qi, h)),
            ),
            compiler_params=cparams(3),
        )(q3, k3, v3)
        return out.reshape(B * S, H)

    # Fallback (head_dim not a multiple of 128, e.g. the tiny demo):
    # split heads with XLA transposes outside the kernel.
    # TODO(synk): pad head_dim to 128 to take the lane-dense path at scale.
    def split(x):
        return (x.reshape(B, S, num_heads, head_dim)
                 .transpose(0, 2, 1, 3)
                 .reshape(B * num_heads, S, head_dim))

    qh, kh, vh = split(qp), split(kp), split(vp)
    BH = B * num_heads
    out = pl.pallas_call(
        kernel,
        out_shape=jax.ShapeDtypeStruct((BH, S, head_dim), qp.dtype),
        grid_spec=pltpu.PrefetchScalarGridSpec(
            num_scalar_prefetch=0,
            grid=(BH, S // tq),
            in_specs=[
                pl.BlockSpec((None, tq, head_dim), lambda bh, qi: (bh, qi, 0)),
                pl.BlockSpec((None, S, head_dim), lambda bh, qi: (bh, 0, 0)),
                pl.BlockSpec((None, S, head_dim), lambda bh, qi: (bh, 0, 0)),
            ],
            out_specs=pl.BlockSpec((None, tq, head_dim),
                                   lambda bh, qi: (bh, qi, 0)),
        ),
        compiler_params=cparams(2),
    )(qh, kh, vh)
    return (out.reshape(B, num_heads, S, head_dim)
               .transpose(0, 2, 1, 3)
               .reshape(B * S, H))


# ---------------------------------------------------------------------------
# Full module forward
# ---------------------------------------------------------------------------
def multi_head_attention(q, k, v, params, *, num_heads: int):
    """q, k, v: (B, S, H) float32.  params: nn.Linear-style weights/biases."""
    B, S, H = q.shape
    assert H % num_heads == 0
    hd = H // num_heads
    scaling = float(hd) ** (-0.5)

    # Pre-transpose nn.Linear weights to (in, out), cast to bf16 (native MXU
    # path, f32 accumulation in-kernel), fold attention scaling into Q.
    wq_t = (params['wq'].T * scaling).astype(jnp.bfloat16)
    bq_s = params['bq'] * scaling                       # bias stays f32
    wk_t = params['wk'].T.astype(jnp.bfloat16)
    wv_t = params['wv'].T.astype(jnp.bfloat16)
    wo_t = params['wo'].T.astype(jnp.bfloat16)

    qf = q.reshape(B * S, H).astype(jnp.bfloat16)

    if (q is k) and (q is v):
        # Self-attention: fused QKV projection -- one pass over the slab.
        w_qkv = jnp.concatenate([wq_t, wk_t, wv_t], axis=1)            # (H, 3H)
        b_qkv = jnp.concatenate([bq_s, params['bk'], params['bv']], axis=1)
        qkv = linear(qf, w_qkv, b_qkv)                                 # (B*S, 3H)
        qp, kp, vp = qkv[:, :H], qkv[:, H:2 * H], qkv[:, 2 * H:]
    else:
        kf = k.reshape(B * S, H).astype(jnp.bfloat16)
        vf = v.reshape(B * S, H).astype(jnp.bfloat16)
        qp = linear(qf, wq_t, bq_s)
        kp = linear(kf, wk_t, params['bk'])
        vp = linear(vf, wv_t, params['bv'])

    ctx = flash_attention(qp, kp, vp, B=B, S=S,
                          num_heads=num_heads, head_dim=hd)            # (B*S, H)

    # Output projection (f32 result).  Hidden dropout is a no-op (rate 0/eval).
    out = linear(ctx, wo_t, params['bo'], out_dtype=jnp.float32)
    return out.reshape(B, S, H)


# ---------------------------------------------------------------------------
# Pure-JAX reference mirroring the PyTorch module semantics (f32)
# ---------------------------------------------------------------------------
def reference_mha(q, k, v, params, *, num_heads: int):
    B, S, H = q.shape
    hd = H // num_heads
    scaling = float(hd) ** (-0.5)

    def lin(x, w, b):
        return x @ w.T + b[0]

    def split(x):  # (B,S,H) -> (B,nh,S,hd)
        return x.reshape(B, S, num_heads, hd).transpose(0, 2, 1, 3)

    qp = split(lin(q, params['wq'], params['bq']))
    kp = split(lin(k, params['wk'], params['bk']))
    vp = split(lin(v, params['wv'], params['bv']))
    scores = jnp.einsum('bnqd,bnkd->bnqk', qp, kp) * scaling
    probs = jax.nn.softmax(scores, axis=-1)
    ctx = jnp.einsum('bnqk,bnkd->bnqd', probs, vp)
    ctx = ctx.transpose(0, 2, 1, 3).reshape(B, S, H)
    return lin(ctx, params['wo'], params['bo'])


if __name__ == "__main__":
    # Small TransformerConfig: hidden_size=32, num_attention_heads=4,
    # qkv_bias=True, dropouts=0.0.  batch=2, seq_len=8.
    B, S, H = 2, 8, 32
    num_heads = 4

    key = jax.random.PRNGKey(0)
    ks = jax.random.split(key, 11)
    scale = 0.1
    params = {
        'wq': scale * jax.random.normal(ks[0], (H, H), jnp.float32),
        'bq': scale * jax.random.normal(ks[1], (1, H), jnp.float32),
        'wk': scale * jax.random.normal(ks[2], (H, H), jnp.float32),
        'bk': scale * jax.random.normal(ks[3], (1, H), jnp.float32),
        'wv': scale * jax.random.normal(ks[4], (H, H), jnp.float32),
        'bv': scale * jax.random.normal(ks[5], (1, H), jnp.float32),
        'wo': scale * jax.random.normal(ks[6], (H, H), jnp.float32),
        'bo': scale * jax.random.normal(ks[7], (1, H), jnp.float32),
    }
    q = jax.random.normal(ks[8], (B, S, H), jnp.float32)
    k = jax.random.normal(ks[9], (B, S, H), jnp.float32)
    v = jax.random.normal(ks[10], (B, S, H), jnp.float32)

    # Cross-attention path (separate q/k/v projections).
    out = multi_head_attention(q, k, v, params, num_heads=num_heads)
    out = jax.block_until_ready(out)
    ref = reference_mha(q, k, v, params, num_heads=num_heads)
    assert out.shape == (B, S, H)
    # Tolerance accounts for bf16 MXU inputs and the EUP approximate reciprocal.
    assert jnp.allclose(out, ref, atol=3e-2, rtol=3e-2), "mismatch vs reference"

    # Self-attention path (fused QKV projection).
    out_self = jax.block_until_ready(
        multi_head_attention(q, q, q, params, num_heads=num_heads))
    ref_self = reference_mha(q, q, q, params, num_heads=num_heads)
    assert jnp.allclose(out_self, ref_self, atol=3e-2, rtol=3e-2), \
        "mismatch vs reference (self-attention)"

    print("KERNEL_OK")
</pallas_src>

<mosaic_0001>
module attributes {stable_mosaic.version = 11 : i64} {
  func.func @_linear_kernel(%arg0: i32, %arg1: memref<16x32xbf16, #tpu.memory_space<vmem>>, %arg2: memref<32x32xbf16, #tpu.memory_space<vmem>>, %arg3: memref<1x32xf32, #tpu.memory_space<vmem>>, %arg4: memref<16x32xbf16, #tpu.memory_space<vmem>>) attributes {dimension_semantics = [#tpu.dimension_semantics<parallel>], iteration_bounds = array<i64: 1>, scalar_prefetch = 0 : i64, scratch_operands = 0 : i64, tpu.core_type = #tpu.core_type<tc>, window_params = [{transform_indices = @transform_0, window_bounds = array<i64: 16, 32>}, {pipeline_mode = #tpu.pipeline_mode<synchronous>, transform_indices = @transform_1, window_bounds = array<i64: 32, 32>}, {pipeline_mode = #tpu.pipeline_mode<synchronous>, transform_indices = @transform_2, window_bounds = array<i64: 1, 32>}, {transform_indices = @transform_3, window_bounds = array<i64: 16, 32>}]} {
    %c0 = arith.constant 0 : index
    %c0_0 = arith.constant 0 : index
    %0 = vector.load %arg1[%c0, %c0_0] : memref<16x32xbf16, #tpu.memory_space<vmem>>, vector<16x32xbf16>
    %c0_1 = arith.constant 0 : index
    %c0_2 = arith.constant 0 : index
    %1 = vector.load %arg2[%c0_1, %c0_2] : memref<32x32xbf16, #tpu.memory_space<vmem>>, vector<32x32xbf16>
    %cst = arith.constant dense<0.000000e+00> : vector<16x32xf32>
    %2 = tpu.matmul %0, %1, %cst {dimension_numbers = #tpu.dot_dimension_numbers<[1], [0], [0], [1], [0, 0, 1, 1], [], []>} : vector<16x32xbf16>, vector<32x32xbf16>, vector<16x32xf32> -> vector<16x32xf32>
    %c0_3 = arith.constant 0 : index
    %c0_4 = arith.constant 0 : index
    %3 = vector.load %arg3[%c0_3, %c0_4] : memref<1x32xf32, #tpu.memory_space<vmem>>, vector<1x32xf32>
    %4 = vector.broadcast %3 : vector<1x32xf32> to vector<16x32xf32>
    %5 = arith.addf %2, %4 : vector<16x32xf32>
    %6 = arith.truncf %5 : vector<16x32xf32> to vector<16x32xbf16>
    %c0_5 = arith.constant 0 : index
    %c0_6 = arith.constant 0 : index
    %7 = vector.load %arg4[%c0_5, %c0_6] : memref<16x32xbf16, #tpu.memory_space<vmem>>, vector<16x32xbf16>
    tpu.vector_store %arg4[%c0_5, %c0_6], %6 {strides = array<i32>} : memref<16x32xbf16, #tpu.memory_space<vmem>>, vector<16x32xbf16>,
    return
  }
  func.func @transform_0(%arg0: i32) -> (i32, i32) {
    %c0_i32 = arith.constant 0 : i32
    %c0_i32_0 = arith.constant 0 : i32
    return %arg0, %c0_i32 : i32, i32
  }
  func.func @transform_1(%arg0: i32) -> (i32, i32) {
    %c0_i32 = arith.constant 0 : i32
    %c0_i32_0 = arith.constant 0 : i32
    %c0_i32_1 = arith.constant 0 : i32
    return %c0_i32, %c0_i32_0 : i32, i32
  }
  func.func @transform_2(%arg0: i32) -> (i32, i32) {
    %c0_i32 = arith.constant 0 : i32
    %c0_i32_0 = arith.constant 0 : i32
    %c0_i32_1 = arith.constant 0 : i32
    return %c0_i32, %c0_i32_0 : i32, i32
  }
  func.func @transform_3(%arg0: i32) -> (i32, i32) {
    %c0_i32 = arith.constant 0 : i32
    %c0_i32_0 = arith.constant 0 : i32
    return %arg0, %c0_i32 : i32, i32
  }
}

</mosaic_0001>

<llo_original>
// kernel: tpu_custom_call.1
$region0: #{tpu_custom_call.1}
  #allocation0 [shape = 'u32[]', space=smem, size = 0x4, offset = 0x4, fixed_abs, tag = 'smem constant byte address 0x4 - core index']
  #allocation1 [shape = 'u32[144,128]{1,0:T(1,128)}', space=vmem, size = 0x12000, scoped, tag = 'internal scratch']
  %s0 = inlined_call_operand.hbm [shape: bf16[16,32], index: 0, kind: input, shape index: {}]
  %s1 = inlined_call_operand.hbm [shape: bf16[32,32], index: 1, kind: input, shape index: {}]
  %s2 = inlined_call_operand.vmem [shape: f32[1,32], index: 2, kind: input, shape index: {}]
  %s3 = inlined_call_operand.hbm [shape: bf16[16,32], index: 3, kind: output, shape index: {}]
  %s4 = sld [smem:[#allocation0]]
  $region30: #{tpu_custom_call.1} parent=0
    _
  %s6 = ssub.s32 1, %s4
  %s7 = scalar_select 0, %s6, %s4
  $region1: #{tpu_custom_call.1} parent=0
    #allocation2 [shape = 'u8[4096]{0}', space=vmem, size = 0x1000, scoped, tag = 'input window, operand 0, single buffered']
    #allocation3 [shape = 's32[1]{0}', space=sflag, size = 0x4, scoped, tag = 'scoped memory for tpu_custom_call.1']
    #allocation4 [shape = 's32[1]{0}', space=sflag, size = 0x4, scoped, tag = 'scoped memory for tpu_custom_call.1']
    #allocation5 [shape = 'u8[8192]{0}', space=vmem, size = 0x2000, scoped, tag = 'input window, operand 1, single buffered']
    #allocation6 [shape = 's32[1]{0}', space=sflag, size = 0x4, scoped, tag = 'scoped memory for tpu_custom_call.1']
    #allocation7 [shape = 'u8[4096]{0}', space=vmem, size = 0x1000, scoped, tag = 'output window, operand 0, single buffered']
    %8 = vsyncpa [#allocation3], 0
    %9 = vsyncpa [#allocation6], 0
    %10 = vsyncpa [#allocation4], 0
    // Predicated region
    $region2: #{tpu_custom_call.1} parent=1 // pred_check
      _
    $region3: #{tpu_custom_call.1} parent=1 // pred_check_branch
      %12 = sbr.rel (0) target = $region5
    $region4: #{tpu_custom_call.1} parent=1 // pred_region
      %s14 = ssub.s32 128, 128
      %15 = vsyncadd [#allocation3], %s14
      %s16 = sshll.u32 [#allocation2], 4
      %s17 = int_to_ptr.vmem [resolvable:$true] %s16
      %22 = dma.hbm_to_vmem [thread:$0]  %s0, 128, %s17, [#allocation3], 64, 64, 4
    $region5: #{tpu_custom_call.1} parent=1 // pred_fallthru
      _
    // Predicated region
    $region6: #{tpu_custom_call.1} parent=1 // pred_check
      _
    $region7: #{tpu_custom_call.1} parent=1 // pred_check_branch
      %24 = sbr.rel (0) target = $region9
    $region8: #{tpu_custom_call.1} parent=1 // pred_region
      %s26 = ssub.s32 256, 256
      %27 = vsyncadd [#allocation6], %s26
      %s28 = sshll.u32 [#allocation5], 4
      %s29 = int_to_ptr.vmem [resolvable:$true] %s28
      %34 = dma.hbm_to_vmem [thread:$0]  %s1, 256, %s29, [#allocation6], 64, 64, 4
    $region9: #{tpu_custom_call.1} parent=1 // pred_fallthru
      _
    // Predicated region
    $region10: #{tpu_custom_call.1} parent=1 // pred_check
      _
    $region11: #{tpu_custom_call.1} parent=1 // pred_check_branch
      %36 = sbr.rel (0) target = $region13
    $region12: #{tpu_custom_call.1} parent=1 // pred_region
      _
    $region13: #{tpu_custom_call.1} parent=1 // pred_fallthru
      _
    // Predicated region
    $region14: #{tpu_custom_call.1} parent=1 // pred_check
      _
    $region15: #{tpu_custom_call.1} parent=1 // pred_check_branch
      %38 = sbr.rel (0) target = $region17
    $region16: #{tpu_custom_call.1} parent=1 // pred_region
      %39 = dma.done [#allocation3], 128
    $region17: #{tpu_custom_call.1} parent=1 // pred_fallthru
      _
    // Predicated region
    $region18: #{tpu_custom_call.1} parent=1 // pred_check
      _
    $region19: #{tpu_custom_call.1} parent=1 // pred_check_branch
      %41 = sbr.rel (0) target = $region21
    $region20: #{tpu_custom_call.1} parent=1 // pred_region
      %42 = dma.done [#allocation6], 256
    $region21: #{tpu_custom_call.1} parent=1 // pred_fallthru
      _
    %v44 = vld [vmem:[#allocation2] sm:$0xf]
    %v45 = vld [vmem:[#allocation2 + $0x4] sm:$0xf]
    %v46 = vld [vmem:[#allocation5] sm:$0xf]
    %v47 = vld [vmem:[#allocation5 + $0x4] sm:$0xf]
    %v48 = vld [vmem:[#allocation5 + $0x8] sm:$0xf]
    %v49 = vld [vmem:[#allocation5 + $0xc] sm:$0xf]
    %v50 = vld [vmem:[%s2] sm:$0x1]
    %v52 = vlaneseq
    %v53 = vshrl.u32 %v52, 7
    %v54 = vsub.s32 0, %v53
    %v55 = vrot.slane %v50, %v54
    %v59 = vunpack.c.l.b16 %v44
    %v60 = vunpack.c.l.b16 %v45
    %v61 = vpack.c.b16 %v60, %v59
    %v66 = vunpack.c.l.b16 %v46
    %v67 = vunpack.c.l.b16 %v47
    %v68 = vunpack.c.l.b16 %v48
    %v69 = vunpack.c.l.b16 %v49
    %v70 = vpack.c.b16 %v67, %v66
    %v71 = vpack.c.b16 %v69, %v68
    %vm74 = vcmask 261120
    %v76 = vsel %vm74, %v61, 0
    %78 = vmatprep.subr.bf16.mxu0 0
    %79 = vmatpush1.bf16.msra.mxu0 0
    %80 = vmatprep.subr.bf16.mxu0 0
    %81 = vmatpush1.bf16.msra.mxu0 0
    %82 = vmatprep.subr.bf16.mxu0 0
    %83 = vmatpush1.bf16.msra.mxu0 0
    %84 = vmatprep.subr.bf16.mxu0 0
    %85 = vmatpush1.bf16.msra.mxu0 0
    %86 = vmatprep.subr.bf16.mxu0 0
    %87 = vmatpush1.bf16.msra.mxu0 0
    %88 = vmatprep.subr.bf16.mxu0 0
    %89 = vmatpush1.bf16.msra.mxu0 0
    %90 = vmatprep.subr.bf16.mxu0 0
    %91 = vmatpush1.bf16.msra.mxu0 %v71
    %92 = vmatprep.subr.bf16.mxu0 0
    %93 = vmatpush1.bf16.msra.mxu0 %v70
    %94 = vmatprep.subr.bf16.mxu0 0
    %95 = vmatpush2.bf16.msra.mxu0 0
    %96 = vmatprep.subr.bf16.mxu0 0
    %97 = vmatpush2.bf16.msra.mxu0 0
    %98 = vmatprep.subr.bf16.mxu0 0
    %99 = vmatpush2.bf16.msra.mxu0 0
    %100 = vmatprep.subr.bf16.mxu0 0
    %101 = vmatpush2.bf16.msra.mxu0 0
    %102 = vmatprep.subr.bf16.mxu0 0
    %103 = vmatpush2.bf16.msra.mxu0 0
    %104 = vmatprep.subr.bf16.mxu0 0
    %105 = vmatpush2.bf16.msra.mxu0 0
    %106 = vmatprep.subr.bf16.mxu0 0
    %107 = vmatpush2.bf16.msra.mxu0 0
    %108 = vmatprep.subr.bf16.mxu0 0
    %109 = vmatpush2.bf16.msra.mxu0 0
    %110 = vmatprep.mubr.bf16.mxu0 0
    %111 = vmatmul.mubr.bf16.gmra.mxu0 %v76
    %v112 = vpop.f32.mrf.mxu0
    %v113 = vadd.f32 %v55, %v112
    %v114 = vpop.f32.mrf.mxu0
    %v115 = vpop.f32.mrf.mxu0
    %v116 = vadd.f32 %v55, %v115
    %v117 = vpop.f32.mrf.mxu0
    %118 = vdwg.mxu0
    %v119 = vpack.c.bf16 %v116, %v113
    %v121 = vunpack.c.l.b16 %v119
    %v122 = vunpack.c.h.b16 %v119
    %v123 = vpack.c.b16 %v121, %v121
    %v124 = vpack.c.b16 %v122, %v122
    %vm127 = vcmask 257024
    %128 = vst.msk [vmem:[#allocation7] sm:$0xf] %vm127, %v123
    %129 = vst.msk [vmem:[#allocation7 + $0x4] sm:$0xf] %vm127, %v124
    // Predicated region
    $region22: #{tpu_custom_call.1} parent=1 // pred_check
      _
    $region23: #{tpu_custom_call.1} parent=1 // pred_check_branch
      %131 = sbr.rel (0) target = $region25
    $region24: #{tpu_custom_call.1} parent=1 // pred_region
      %s133 = ssub.s32 128, 128
      %134 = vsyncadd [#allocation4], %s133
      %s135 = sshll.u32 [#allocation7], 4
      %s136 = int_to_ptr.vmem [resolvable:$true] %s135
      %141 = dma.vmem_to_hbm [thread:$0]  %s136, 128, %s3, [#allocation4], 64, 64, 4
    $region25: #{tpu_custom_call.1} parent=1 // pred_fallthru
      _
    // Predicated region
    $region26: #{tpu_custom_call.1} parent=1 // pred_check
      _
    $region27: #{tpu_custom_call.1} parent=1 // pred_check_branch
      %143 = sbr.rel (0) target = $region29
    $region28: #{tpu_custom_call.1} parent=1 // pred_region
      %144 = dma.done [#allocation4], 128
    $region29: #{tpu_custom_call.1} parent=1 // pred_fallthru
      _
    %145 = vsyncpa [#allocation3], 1
    %146 = vsyncpa [#allocation6], 1
    %147 = vsyncpa [#allocation4], 1

</llo_original>
